<compile_context>
chip_gen: v6e
topology: v6e:2x2x1
jax: 0.10.0
libtpu: 0.0.40
codegen_flags: <defaults>
</compile_context>

<pallas_src>
import functools
import math

import jax
import jax.numpy as jnp
from jax.experimental import pallas as pl
from jax.experimental.pallas import tpu as pltpu

_LANES = 128
_TARGET_BLOCK_ROWS = 2048   # 1 MiB per f32 input per block
_ACC_ROWS = 64              # 8 f32 vregs -> 8 independent accumulation chains


def _sq_residual(a, b):
    """Elementwise (a - b)^2  (reconstruction term)."""
    r = a - b
    return r * r


def _kl_term(mu, lv):
    """Elementwise mu^2 + exp(lv) - lv - 1  (KL-vs-unit-normal term)."""
    return mu * mu + (jnp.exp(lv) - 1.0) - lv


def _pair_sum_kernel(a_ref, b_ref, o_ref, *, fn, total_rows, block_rows, acc_rows):
    k = pl.program_id(0)

    @pl.when(k == 0)
    def _init():
        o_ref[...] = jnp.zeros_like(o_ref)

    # Cast after load so bf16 inputs travel HBM->VMEM at half the bytes.
    t = fn(a_ref[...].astype(jnp.float32), b_ref[...].astype(jnp.float32))

    if total_rows % block_rows != 0:
        # Ragged last block: Pallas edge-block padding is undefined -> mask it.
        # (All-true for earlier, fully-valid blocks; only emitted if needed.)
        row_ids = jax.lax.broadcasted_iota(jnp.int32, t.shape, 0)
        valid = total_rows - k * block_rows
        t = jnp.where(row_ids < valid, t, 0.0)

    # Fold into the small resident accumulator (constant output block index
    # => tile lives in VMEM across the whole grid; one HBM write-back).
    o_ref[...] += t.reshape(-1, acc_rows, t.shape[-1]).sum(axis=0)


def _pair_sum(a, b, fn, *, flops_per_elem, trans_per_elem):
    """sum(fn(a, b)) over all elements, as an f32 scalar (streaming Pallas reduction)."""
    n = a.size
    if n == 0:
        return jnp.float32(0.0)

    a_flat = a.reshape(-1)
    b_flat = b.reshape(-1)
    rows = n // _LANES
    tail = n - rows * _LANES

    total = jnp.float32(0.0)
    if tail:
        # Sub-128-element tail: tiny jnp reduction in the wrapper.
        total = total + jnp.sum(fn(a_flat[rows * _LANES:].astype(jnp.float32),
                                   b_flat[rows * _LANES:].astype(jnp.float32)))
    if rows == 0:
        return total

    if tail:
        # Only in the (rare) non-128-divisible case does this prefix slice copy.
        a2 = a_flat[: rows * _LANES].reshape(rows, _LANES)
        b2 = b_flat[: rows * _LANES].reshape(rows, _LANES)
    else:
        # Contiguous reshape -> bitcast: zero extra HBM traffic.
        a2 = a_flat.reshape(rows, _LANES)
        b2 = b_flat.reshape(rows, _LANES)

    itemsize = max(a.dtype.itemsize, b.dtype.itemsize)
    min_align = {4: 8, 2: 16, 1: 32}.get(itemsize, 8)   # sublane packing per dtype

    if rows >= _ACC_ROWS:
        acc_rows = _ACC_ROWS
    elif rows >= min_align:
        acc_rows = min_align
    else:
        acc_rows = rows            # block equals the full (sub-tile) array extent
    block_rows = min(_TARGET_BLOCK_ROWS, (rows // acc_rows) * acc_rows)
    n_blocks = -(-rows // block_rows)

    cost = pl.CostEstimate(
        flops=flops_per_elem * rows * _LANES,
        transcendentals=trans_per_elem * rows * _LANES,
        bytes_accessed=(a2.dtype.itemsize + b2.dtype.itemsize) * rows * _LANES
        + acc_rows * _LANES * 4)

    kernel = functools.partial(_pair_sum_kernel, fn=fn, total_rows=rows,
                               block_rows=block_rows, acc_rows=acc_rows)

    part = pl.pallas_call(
        kernel,
        out_shape=jax.ShapeDtypeStruct((acc_rows, _LANES), jnp.float32),
        grid=(n_blocks,),
        in_specs=[pl.BlockSpec((block_rows, _LANES), lambda k: (k, 0)),
                  pl.BlockSpec((block_rows, _LANES), lambda k: (k, 0))],
        out_specs=pl.BlockSpec((acc_rows, _LANES), lambda k: (0, 0)),
        compiler_params=pltpu.CompilerParams(dimension_semantics=("arbitrary",)),
        cost_estimate=cost,
    )(a2, b2)

    return total + jnp.sum(part)


def fixed_std_nll_loss(x, x_mu, x_logvar, z_mu, z_logvar, fixed_var=1.0):
    """JAX/Pallas equivalent of FixedStdNllLoss.forward((x, x_mu, x_logvar, z_mu, z_logvar))."""
    del x_logvar  # NOT USED (matches the PyTorch module)
    # TODO(synk): loss_logging_listener (host-side per-term dict logging) is not implemented.
    B = x.shape[0]
    n_pixels = x.shape[-2] * x.shape[-1]
    fixed_var = float(fixed_var)

    s1 = _pair_sum(x, x_mu, _sq_residual, flops_per_elem=3, trans_per_elem=0)
    s2 = _pair_sum(z_mu, z_logvar, _kl_term, flops_per_elem=5, trans_per_elem=1)

    const = 0.5 * n_pixels * (math.log(fixed_var) + math.log(2.0 * math.pi))
    return (0.5 / (B * fixed_var)) * s1 + (0.5 / B) * s2 + jnp.float32(const)


def _reference(x, x_mu, x_logvar, z_mu, z_logvar, fixed_var=1.0):
    """Pure-JAX reference mirroring the PyTorch module."""
    del x_logvar
    B = x.shape[0]
    n_pixels = x.shape[-2] * x.shape[-1]
    r = (x - x_mu).reshape(B, -1)
    nll = (0.5 * (jnp.sum(r * r / fixed_var, axis=1) + n_pixels * math.log(fixed_var))
           + 0.5 * n_pixels * math.log(2.0 * math.pi))
    var = jnp.exp(z_logvar)
    kl = 0.5 * (jnp.einsum('bihw,bihw->bhw', z_mu, z_mu)
                + jnp.sum(var, axis=1) - jnp.sum(z_logvar, axis=1) - z_mu.shape[1])
    kl = kl.sum(axis=(1, 2))
    return jnp.mean(nll) + jnp.mean(kl)


if __name__ == "__main__":
    configs = [
        # (B, C, H, W, D, fixed_var, dtype)  -- the module only supports C=1 (grayscale)
        (2, 1, 64, 64, 8, 1.0, jnp.float32),   # lane-aligned streams, no masking path
        (3, 1, 24, 40, 5, 0.5, jnp.float32),   # ragged: sub-128 tail + masked edge block
        (1, 1, 16, 16, 2, 1.0, jnp.float32),   # tiny: sub-8-row full-extent blocks
        (2, 1, 64, 64, 8, 2.0, jnp.bfloat16),  # bf16 inputs stay bf16 on the wire
    ]
    key = jax.random.PRNGKey(0)
    for (B, C, H, W, D, fv, dt) in configs:
        key, k1, k2, k3, k4, k5 = jax.random.split(key, 6)
        x = jax.random.normal(k1, (B, C, H, W), dtype=jnp.float32).astype(dt)
        x_mu = jax.random.normal(k2, (B, C, H, W), dtype=jnp.float32).astype(dt)
        x_logvar = jax.random.normal(k3, (B, C, H, W), dtype=jnp.float32).astype(dt)  # unused
        z_mu = jax.random.normal(k4, (B, D, H, W), dtype=jnp.float32).astype(dt)
        z_logvar = (0.1 * jax.random.normal(k5, (B, D, H, W), dtype=jnp.float32)).astype(dt)

        loss = jax.jit(fixed_std_nll_loss, static_argnums=(5,))(
            x, x_mu, x_logvar, z_mu, z_logvar, fv)
        loss = jax.block_until_ready(loss)

        ref = _reference(x.astype(jnp.float32), x_mu.astype(jnp.float32),
                         x_logvar.astype(jnp.float32), z_mu.astype(jnp.float32),
                         z_logvar.astype(jnp.float32), fv)
        assert jnp.allclose(loss, ref, rtol=1e-5, atol=1e-3), \
            (loss, ref, (B, C, H, W, D, fv, dt))

    print("KERNEL_OK")
</pallas_src>

<mosaic_0001>
module attributes {stable_mosaic.version = 11 : i64} {
  func.func @_pair_sum_kernel(%arg0: i32, %arg1: memref<512x128xf32, #tpu.memory_space<vmem>>, %arg2: memref<512x128xf32, #tpu.memory_space<vmem>>, %arg3: memref<64x128xf32, #tpu.memory_space<vmem>>) attributes {dimension_semantics = [#tpu.dimension_semantics<arbitrary>], iteration_bounds = array<i64: 1>, scalar_prefetch = 0 : i64, scratch_operands = 0 : i64, tpu.core_type = #tpu.core_type<tc>, window_params = [{transform_indices = @transform_0, window_bounds = array<i64: 512, 128>}, {transform_indices = @transform_1, window_bounds = array<i64: 512, 128>}, {pipeline_mode = #tpu.pipeline_mode<synchronous>, transform_indices = @transform_2, window_bounds = array<i64: 64, 128>}]} {
    %c0_i32 = arith.constant 0 : i32
    %0 = arith.cmpi eq, %arg0, %c0_i32 : i32
    %1 = arith.extui %0 : i1 to i32
    %c0_i32_0 = arith.constant 0 : i32
    %2 = arith.cmpi ne, %1, %c0_i32_0 : i32
    scf.if %2 {
      %cst_9 = arith.constant 0.000000e+00 : f32
      %16 = vector.broadcast %cst_9 : f32 to vector<64x128xf32>
      %c0_10 = arith.constant 0 : index
      %c0_11 = arith.constant 0 : index
      %17 = vector.load %arg3[%c0_10, %c0_11] : memref<64x128xf32, #tpu.memory_space<vmem>>, vector<64x128xf32>
      tpu.vector_store %arg3[%c0_10, %c0_11], %16 {strides = array<i32>} : memref<64x128xf32, #tpu.memory_space<vmem>>, vector<64x128xf32>,
    } else {
    }
    %c0 = arith.constant 0 : index
    %c0_1 = arith.constant 0 : index
    %3 = vector.load %arg1[%c0, %c0_1] : memref<512x128xf32, #tpu.memory_space<vmem>>, vector<512x128xf32>
    %c0_2 = arith.constant 0 : index
    %c0_3 = arith.constant 0 : index
    %4 = vector.load %arg2[%c0_2, %c0_3] : memref<512x128xf32, #tpu.memory_space<vmem>>, vector<512x128xf32>
    %5 = arith.mulf %3, %3 : vector<512x128xf32>
    %6 = math.exp %4 : vector<512x128xf32>
    %cst = arith.constant 1.000000e+00 : f32
    %7 = vector.broadcast %cst : f32 to vector<512x128xf32>
    %8 = arith.subf %6, %7 : vector<512x128xf32>
    %9 = arith.addf %5, %8 : vector<512x128xf32>
    %10 = arith.subf %9, %4 : vector<512x128xf32>
    %c0_4 = arith.constant 0 : index
    %c0_5 = arith.constant 0 : index
    %11 = vector.load %arg3[%c0_4, %c0_5] : memref<64x128xf32, #tpu.memory_space<vmem>>, vector<64x128xf32>
    %12 = vector.shape_cast %10 : vector<512x128xf32> to vector<8x64x128xf32>
    %cst_6 = arith.constant dense<0.000000e+00> : vector<64x128xf32>
    %13 = vector.multi_reduction <add>, %12, %cst_6 [0] : vector<8x64x128xf32> to vector<64x128xf32>
    %14 = arith.addf %11, %13 : vector<64x128xf32>
    %c0_7 = arith.constant 0 : index
    %c0_8 = arith.constant 0 : index
    %15 = vector.load %arg3[%c0_7, %c0_8] : memref<64x128xf32, #tpu.memory_space<vmem>>, vector<64x128xf32>
    tpu.vector_store %arg3[%c0_7, %c0_8], %14 {strides = array<i32>} : memref<64x128xf32, #tpu.memory_space<vmem>>, vector<64x128xf32>,
    return
  }
  func.func @transform_0(%arg0: i32) -> (i32, i32) {
    %c0_i32 = arith.constant 0 : i32
    %c0_i32_0 = arith.constant 0 : i32
    return %arg0, %c0_i32 : i32, i32
  }
  func.func @transform_1(%arg0: i32) -> (i32, i32) {
    %c0_i32 = arith.constant 0 : i32
    %c0_i32_0 = arith.constant 0 : i32
    return %arg0, %c0_i32 : i32, i32
  }
  func.func @transform_2(%arg0: i32) -> (i32, i32) {
    %c0_i32 = arith.constant 0 : i32
    %c0_i32_0 = arith.constant 0 : i32
    %c0_i32_1 = arith.constant 0 : i32
    return %c0_i32, %c0_i32_0 : i32, i32
  }
}

module attributes {stable_mosaic.version = 11 : i64} {
  func.func @_pair_sum_kernel(%arg0: i32, %arg1: memref<64x128xf32, #tpu.memory_space<vmem>>, %arg2: memref<64x128xf32, #tpu.memory_space<vmem>>, %arg3: memref<64x128xf32, #tpu.memory_space<vmem>>) attributes {dimension_semantics = [#tpu.dimension_semantics<arbitrary>], iteration_bounds = array<i64: 1>, scalar_prefetch = 0 : i64, scratch_operands = 0 : i64, tpu.core_type = #tpu.core_type<tc>, window_params = [{transform_indices = @transform_0, window_bounds = array<i64: 64, 128>}, {transform_indices = @transform_1, window_bounds = array<i64: 64, 128>}, {pipeline_mode = #tpu.pipeline_mode<synchronous>, transform_indices = @transform_2, window_bounds = array<i64: 64, 128>}]} {
    %c0_i32 = arith.constant 0 : i32
    %0 = arith.cmpi eq, %arg0, %c0_i32 : i32
    %1 = arith.extui %0 : i1 to i32
    %c0_i32_0 = arith.constant 0 : i32
    %2 = arith.cmpi ne, %1, %c0_i32_0 : i32
    scf.if %2 {
      %cst_8 = arith.constant 0.000000e+00 : f32
      %12 = vector.broadcast %cst_8 : f32 to vector<64x128xf32>
      %c0_9 = arith.constant 0 : index
      %c0_10 = arith.constant 0 : index
      %13 = vector.load %arg3[%c0_9, %c0_10] : memref<64x128xf32, #tpu.memory_space<vmem>>, vector<64x128xf32>
      tpu.vector_store %arg3[%c0_9, %c0_10], %12 {strides = array<i32>} : memref<64x128xf32, #tpu.memory_space<vmem>>, vector<64x128xf32>,
    } else {
    }
    %c0 = arith.constant 0 : index
    %c0_1 = arith.constant 0 : index
    %3 = vector.load %arg1[%c0, %c0_1] : memref<64x128xf32, #tpu.memory_space<vmem>>, vector<64x128xf32>
    %c0_2 = arith.constant 0 : index
    %c0_3 = arith.constant 0 : index
    %4 = vector.load %arg2[%c0_2, %c0_3] : memref<64x128xf32, #tpu.memory_space<vmem>>, vector<64x128xf32>
    %5 = arith.subf %3, %4 : vector<64x128xf32>
    %6 = arith.mulf %5, %5 : vector<64x128xf32>
    %c0_4 = arith.constant 0 : index
    %c0_5 = arith.constant 0 : index
    %7 = vector.load %arg3[%c0_4, %c0_5] : memref<64x128xf32, #tpu.memory_space<vmem>>, vector<64x128xf32>
    %8 = vector.shape_cast %6 : vector<64x128xf32> to vector<1x64x128xf32>
    %cst = arith.constant dense<0.000000e+00> : vector<64x128xf32>
    %9 = vector.multi_reduction <add>, %8, %cst [0] : vector<1x64x128xf32> to vector<64x128xf32>
    %10 = arith.addf %7, %9 : vector<64x128xf32>
    %c0_6 = arith.constant 0 : index
    %c0_7 = arith.constant 0 : index
    %11 = vector.load %arg3[%c0_6, %c0_7] : memref<64x128xf32, #tpu.memory_space<vmem>>, vector<64x128xf32>
    tpu.vector_store %arg3[%c0_6, %c0_7], %10 {strides = array<i32>} : memref<64x128xf32, #tpu.memory_space<vmem>>, vector<64x128xf32>,
    return
  }
  func.func @transform_0(%arg0: i32) -> (i32, i32) {
    %c0_i32 = arith.constant 0 : i32
    %c0_i32_0 = arith.constant 0 : i32
    return %arg0, %c0_i32 : i32, i32
  }
  func.func @transform_1(%arg0: i32) -> (i32, i32) {
    %c0_i32 = arith.constant 0 : i32
    %c0_i32_0 = arith.constant 0 : i32
    return %arg0, %c0_i32 : i32, i32
  }
  func.func @transform_2(%arg0: i32) -> (i32, i32) {
    %c0_i32 = arith.constant 0 : i32
    %c0_i32_0 = arith.constant 0 : i32
    %c0_i32_1 = arith.constant 0 : i32
    return %c0_i32, %c0_i32_0 : i32, i32
  }
}

</mosaic_0001>

<llo_original>
// kernel: fixed_std_nll_loss.2
$region0: #{fixed_std_nll_loss.2}
  #allocation0 [shape = 'u32[]', space=smem, size = 0x4, offset = 0x4, fixed_abs, tag = 'smem constant byte address 0x4 - core index']
  #allocation1 [shape = 'u32[144,128]{1,0:T(1,128)}', space=vmem, size = 0x12000, scoped, tag = 'internal scratch']
  %s0 = inlined_call_operand.vmem [shape: f32[64,128], index: 0, kind: input, shape index: {}]
  %s1 = inlined_call_operand.vmem [shape: f32[64,128], index: 1, kind: input, shape index: {}]
  %s2 = inlined_call_operand.vmem [shape: f32[64,128], index: 2, kind: output, shape index: {}]
  %s3 = sld [smem:[#allocation0]]
  $region22: #{fixed_std_nll_loss.2} parent=0
    _
  %s5 = ssub.s32 1, %s3
  %s6 = scalar_select 0, %s5, %s3
  // Predicated region
  $region2: #{fixed_std_nll_loss.2} parent=0 // pred_check
    _
  $region3: #{fixed_std_nll_loss.2} parent=0 // pred_check_branch
    %8 = sbr.rel (0) target = $region5
  $region4: #{fixed_std_nll_loss.2} parent=0 // pred_region
    _
  $region5: #{fixed_std_nll_loss.2} parent=0 // pred_fallthru
    _
  // Predicated region
  $region6: #{fixed_std_nll_loss.2} parent=0 // pred_check
    _
  $region7: #{fixed_std_nll_loss.2} parent=0 // pred_check_branch
    %10 = sbr.rel (0) target = $region9
  $region8: #{fixed_std_nll_loss.2} parent=0 // pred_region
    _
  $region9: #{fixed_std_nll_loss.2} parent=0 // pred_fallthru
    _
  %p11 = scmp.eq.s32.totalorder 0, 0
  // Predicated region
  $region10: #{fixed_std_nll_loss.2} parent=0 // pred_check
    %p12 = pneg %p11
  $region11: #{fixed_std_nll_loss.2} parent=0 // pred_check_branch
    %14 = sbr.rel (%p12) target = $region13
  $region12: #{fixed_std_nll_loss.2} parent=0 // pred_region
    %15 = vst [vmem:[%s2] sm:$0xff] 0.0
    %16 = vst [vmem:[%s2 + $0x8] sm:$0xff] 0.0
    %17 = vst [vmem:[%s2 + $0x10] sm:$0xff] 0.0
    %18 = vst [vmem:[%s2 + $0x18] sm:$0xff] 0.0
    %19 = vst [vmem:[%s2 + $0x20] sm:$0xff] 0.0
    %20 = vst [vmem:[%s2 + $0x28] sm:$0xff] 0.0
    %21 = vst [vmem:[%s2 + $0x30] sm:$0xff] 0.0
    %22 = vst [vmem:[%s2 + $0x38] sm:$0xff] 0.0
  $region13: #{fixed_std_nll_loss.2} parent=0 // pred_fallthru
    _
  %v23 = vld [vmem:[%s0] sm:$0xff]
  %v24 = vld [vmem:[%s0 + $0x8] sm:$0xff]
  %v25 = vld [vmem:[%s0 + $0x10] sm:$0xff]
  %v26 = vld [vmem:[%s0 + $0x18] sm:$0xff]
  %v27 = vld [vmem:[%s0 + $0x20] sm:$0xff]
  %v28 = vld [vmem:[%s0 + $0x28] sm:$0xff]
  %v29 = vld [vmem:[%s0 + $0x30] sm:$0xff]
  %v30 = vld [vmem:[%s0 + $0x38] sm:$0xff]
  %v31 = vld [vmem:[%s1] sm:$0xff]
  %v32 = vld [vmem:[%s1 + $0x8] sm:$0xff]
  %v33 = vld [vmem:[%s1 + $0x10] sm:$0xff]
  %v34 = vld [vmem:[%s1 + $0x18] sm:$0xff]
  %v35 = vld [vmem:[%s1 + $0x20] sm:$0xff]
  %v36 = vld [vmem:[%s1 + $0x28] sm:$0xff]
  %v37 = vld [vmem:[%s1 + $0x30] sm:$0xff]
  %v38 = vld [vmem:[%s1 + $0x38] sm:$0xff]
  %v39 = vsub.f32 %v23, %v31
  %v40 = vsub.f32 %v24, %v32
  %v41 = vsub.f32 %v25, %v33
  %v42 = vsub.f32 %v26, %v34
  %v43 = vsub.f32 %v27, %v35
  %v44 = vsub.f32 %v28, %v36
  %v45 = vsub.f32 %v29, %v37
  %v46 = vsub.f32 %v30, %v38
  %v47 = vmul.f32 %v39, %v39
  %v48 = vmul.f32 %v40, %v40
  %v49 = vmul.f32 %v41, %v41
  %v50 = vmul.f32 %v42, %v42
  %v51 = vmul.f32 %v43, %v43
  %v52 = vmul.f32 %v44, %v44
  %v53 = vmul.f32 %v45, %v45
  %v54 = vmul.f32 %v46, %v46
  %v55 = vld [vmem:[%s2] sm:$0xff]
  %v56 = vld [vmem:[%s2 + $0x8] sm:$0xff]
  %v57 = vld [vmem:[%s2 + $0x10] sm:$0xff]
  %v58 = vld [vmem:[%s2 + $0x18] sm:$0xff]
  %v59 = vld [vmem:[%s2 + $0x20] sm:$0xff]
  %v60 = vld [vmem:[%s2 + $0x28] sm:$0xff]
  %v61 = vld [vmem:[%s2 + $0x30] sm:$0xff]
  %v62 = vld [vmem:[%s2 + $0x38] sm:$0xff]
  %v63 = vadd.f32 %v47, 0.0
  %v64 = vadd.f32 %v48, 0.0
  %v65 = vadd.f32 %v49, 0.0
  %v66 = vadd.f32 %v50, 0.0
  %v67 = vadd.f32 %v51, 0.0
  %v68 = vadd.f32 %v52, 0.0
  %v69 = vadd.f32 %v53, 0.0
  %v70 = vadd.f32 %v54, 0.0
  %v71 = vadd.f32 %v55, %v63
  %v72 = vadd.f32 %v56, %v64
  %v73 = vadd.f32 %v57, %v65
  %v74 = vadd.f32 %v58, %v66
  %v75 = vadd.f32 %v59, %v67
  %v76 = vadd.f32 %v60, %v68
  %v77 = vadd.f32 %v61, %v69
  %v78 = vadd.f32 %v62, %v70
  %79 = vst [vmem:[%s2] sm:$0xff] %v71
  %80 = vst [vmem:[%s2 + $0x8] sm:$0xff] %v72
  %81 = vst [vmem:[%s2 + $0x10] sm:$0xff] %v73
  %82 = vst [vmem:[%s2 + $0x18] sm:$0xff] %v74
  %83 = vst [vmem:[%s2 + $0x20] sm:$0xff] %v75
  %84 = vst [vmem:[%s2 + $0x28] sm:$0xff] %v76
  %85 = vst [vmem:[%s2 + $0x30] sm:$0xff] %v77
  %86 = vst [vmem:[%s2 + $0x38] sm:$0xff] %v78
  // Predicated region
  $region14: #{fixed_std_nll_loss.2} parent=0 // pred_check
    _
  $region15: #{fixed_std_nll_loss.2} parent=0 // pred_check_branch
    %88 = sbr.rel (0) target = $region17
  $region16: #{fixed_std_nll_loss.2} parent=0 // pred_region
    _
  $region17: #{fixed_std_nll_loss.2} parent=0 // pred_fallthru
    _
  // Predicated region
  $region18: #{fixed_std_nll_loss.2} parent=0 // pred_check
    _
  $region19: #{fixed_std_nll_loss.2} parent=0 // pred_check_branch
    %90 = sbr.rel (0) target = $region21
  $region20: #{fixed_std_nll_loss.2} parent=0 // pred_region
    _
  $region21: #{fixed_std_nll_loss.2} parent=0 // pred_fallthru
    _

// kernel: fixed_std_nll_loss.3
$region0: #{fixed_std_nll_loss.3}
  #allocation0 [shape = 'u32[]', space=smem, size = 0x4, offset = 0x4, fixed_abs, tag = 'smem constant byte address 0x4 - core index']
  #allocation1 [shape = 'u32[144,128]{1,0:T(1,128)}', space=vmem, size = 0x12000, scoped, tag = 'internal scratch']
  %s0 = inlined_call_operand.vmem [shape: f32[512,128], index: 0, kind: input, shape index: {}]
  %s1 = inlined_call_operand.vmem [shape: f32[512,128], index: 1, kind: input, shape index: {}]
  %s2 = inlined_call_operand.vmem [shape: f32[64,128], index: 2, kind: output, shape index: {}]
  %s3 = sld [smem:[#allocation0]]
  $region22: #{fixed_std_nll_loss.3} parent=0
    _
  %s5 = ssub.s32 1, %s3
  %s6 = scalar_select 0, %s5, %s3
  // Predicated region
  $region2: #{fixed_std_nll_loss.3} parent=0 // pred_check
    _
  $region3: #{fixed_std_nll_loss.3} parent=0 // pred_check_branch
    %8 = sbr.rel (0) target = $region5
  $region4: #{fixed_std_nll_loss.3} parent=0 // pred_region
    _
  $region5: #{fixed_std_nll_loss.3} parent=0 // pred_fallthru
    _
  // Predicated region
  $region6: #{fixed_std_nll_loss.3} parent=0 // pred_check
    _
  $region7: #{fixed_std_nll_loss.3} parent=0 // pred_check_branch
    %10 = sbr.rel (0) target = $region9
  $region8: #{fixed_std_nll_loss.3} parent=0 // pred_region
    _
  $region9: #{fixed_std_nll_loss.3} parent=0 // pred_fallthru
    _
  %p11 = scmp.eq.s32.totalorder 0, 0
  // Predicated region
  $region10: #{fixed_std_nll_loss.3} parent=0 // pred_check
    %p12 = pneg %p11
  $region11: #{fixed_std_nll_loss.3} parent=0 // pred_check_branch
    %14 = sbr.rel (%p12) target = $region13
  $region12: #{fixed_std_nll_loss.3} parent=0 // pred_region
    %15 = vst [vmem:[%s2] sm:$0xff] 0.0
    %16 = vst [vmem:[%s2 + $0x8] sm:$0xff] 0.0
    %17 = vst [vmem:[%s2 + $0x10] sm:$0xff] 0.0
    %18 = vst [vmem:[%s2 + $0x18] sm:$0xff] 0.0
    %19 = vst [vmem:[%s2 + $0x20] sm:$0xff] 0.0
    %20 = vst [vmem:[%s2 + $0x28] sm:$0xff] 0.0
    %21 = vst [vmem:[%s2 + $0x30] sm:$0xff] 0.0
    %22 = vst [vmem:[%s2 + $0x38] sm:$0xff] 0.0
  $region13: #{fixed_std_nll_loss.3} parent=0 // pred_fallthru
    _
  %v23 = vld [vmem:[%s0] sm:$0xff]
  %v24 = vld [vmem:[%s0 + $0x8] sm:$0xff]
  %v25 = vld [vmem:[%s0 + $0x10] sm:$0xff]
  %v26 = vld [vmem:[%s0 + $0x18] sm:$0xff]
  %v27 = vld [vmem:[%s0 + $0x20] sm:$0xff]
  %v28 = vld [vmem:[%s0 + $0x28] sm:$0xff]
  %v29 = vld [vmem:[%s0 + $0x30] sm:$0xff]
  %v30 = vld [vmem:[%s0 + $0x38] sm:$0xff]
  %v31 = vld [vmem:[%s0 + $0x40] sm:$0xff]
  %v32 = vld [vmem:[%s0 + $0x48] sm:$0xff]
  %v33 = vld [vmem:[%s0 + $0x50] sm:$0xff]
  %v34 = vld [vmem:[%s0 + $0x58] sm:$0xff]
  %v35 = vld [vmem:[%s0 + $0x60] sm:$0xff]
  %v36 = vld [vmem:[%s0 + $0x68] sm:$0xff]
  %v37 = vld [vmem:[%s0 + $0x70] sm:$0xff]
  %v38 = vld [vmem:[%s0 + $0x78] sm:$0xff]
  %v39 = vld [vmem:[%s0 + $0x80] sm:$0xff]
  %v40 = vld [vmem:[%s0 + $0x88] sm:$0xff]
  %v41 = vld [vmem:[%s0 + $0x90] sm:$0xff]
  %v42 = vld [vmem:[%s0 + $0x98] sm:$0xff]
  %v43 = vld [vmem:[%s0 + $0xa0] sm:$0xff]
  %v44 = vld [vmem:[%s0 + $0xa8] sm:$0xff]
  %v45 = vld [vmem:[%s0 + $0xb0] sm:$0xff]
  %v46 = vld [vmem:[%s0 + $0xb8] sm:$0xff]
  %v47 = vld [vmem:[%s0 + $0xc0] sm:$0xff]
  %v48 = vld [vmem:[%s0 + $0xc8] sm:$0xff]
  %v49 = vld [vmem:[%s0 + $0xd0] sm:$0xff]
  %v50 = vld [vmem:[%s0 + $0xd8] sm:$0xff]
  %v51 = vld [vmem:[%s0 + $0xe0] sm:$0xff]
  %v52 = vld [vmem:[%s0 + $0xe8] sm:$0xff]
  %v53 = vld [vmem:[%s0 + $0xf0] sm:$0xff]
  %v54 = vld [vmem:[%s0 + $0xf8] sm:$0xff]
  %v55 = vld [vmem:[%s0 + $0x100] sm:$0xff]
  %v56 = vld [vmem:[%s0 + $0x108] sm:$0xff]
  %v57 = vld [vmem:[%s0 + $0x110] sm:$0xff]
  %v58 = vld [vmem:[%s0 + $0x118] sm:$0xff]
  %v59 = vld [vmem:[%s0 + $0x120] sm:$0xff]
  %v60 = vld [vmem:[%s0 + $0x128] sm:$0xff]
  %v61 = vld [vmem:[%s0 + $0x130] sm:$0xff]
  %v62 = vld [vmem:[%s0 + $0x138] sm:$0xff]
  %v63 = vld [vmem:[%s0 + $0x140] sm:$0xff]
  %v64 = vld [vmem:[%s0 + $0x148] sm:$0xff]
  %v65 = vld [vmem:[%s0 + $0x150] sm:$0xff]
  %v66 = vld [vmem:[%s0 + $0x158] sm:$0xff]
  %v67 = vld [vmem:[%s0 + $0x160] sm:$0xff]
  %v68 = vld [vmem:[%s0 + $0x168] sm:$0xff]
  %v69 = vld [vmem:[%s0 + $0x170] sm:$0xff]
  %v70 = vld [vmem:[%s0 + $0x178] sm:$0xff]
  %v71 = vld [vmem:[%s0 + $0x180] sm:$0xff]
  %v72 = vld [vmem:[%s0 + $0x188] sm:$0xff]
  %v73 = vld [vmem:[%s0 + $0x190] sm:$0xff]
  %v74 = vld [vmem:[%s0 + $0x198] sm:$0xff]
  %v75 = vld [vmem:[%s0 + $0x1a0] sm:$0xff]
  %v76 = vld [vmem:[%s0 + $0x1a8] sm:$0xff]
  %v77 = vld [vmem:[%s0 + $0x1b0] sm:$0xff]
  %v78 = vld [vmem:[%s0 + $0x1b8] sm:$0xff]
  %v79 = vld [vmem:[%s0 + $0x1c0] sm:$0xff]
  %v80 = vld [vmem:[%s0 + $0x1c8] sm:$0xff]
  %v81 = vld [vmem:[%s0 + $0x1d0] sm:$0xff]
  %v82 = vld [vmem:[%s0 + $0x1d8] sm:$0xff]
  %v83 = vld [vmem:[%s0 + $0x1e0] sm:$0xff]
  %v84 = vld [vmem:[%s0 + $0x1e8] sm:$0xff]
  %v85 = vld [vmem:[%s0 + $0x1f0] sm:$0xff]
  %v86 = vld [vmem:[%s0 + $0x1f8] sm:$0xff]
  %v87 = vld [vmem:[%s1] sm:$0xff]
  %v88 = vld [vmem:[%s1 + $0x8] sm:$0xff]
  %v89 = vld [vmem:[%s1 + $0x10] sm:$0xff]
  %v90 = vld [vmem:[%s1 + $0x18] sm:$0xff]
  %v91 = vld [vmem:[%s1 + $0x20] sm:$0xff]
  %v92 = vld [vmem:[%s1 + $0x28] sm:$0xff]
  %v93 = vld [vmem:[%s1 + $0x30] sm:$0xff]
  %v94 = vld [vmem:[%s1 + $0x38] sm:$0xff]
  %v95 = vld [vmem:[%s1 + $0x40] sm:$0xff]
  %v96 = vld [vmem:[%s1 + $0x48] sm:$0xff]
  %v97 = vld [vmem:[%s1 + $0x50] sm:$0xff]
  %v98 = vld [vmem:[%s1 + $0x58] sm:$0xff]
  %v99 = vld [vmem:[%s1 + $0x60] sm:$0xff]
  %v100 = vld [vmem:[%s1 + $0x68] sm:$0xff]
  %v101 = vld [vmem:[%s1 + $0x70] sm:$0xff]
  %v102 = vld [vmem:[%s1 + $0x78] sm:$0xff]
  %v103 = vld [vmem:[%s1 + $0x80] sm:$0xff]
  %v104 = vld [vmem:[%s1 + $0x88] sm:$0xff]
  %v105 = vld [vmem:[%s1 + $0x90] sm:$0xff]
  %v106 = vld [vmem:[%s1 + $0x98] sm:$0xff]
  %v107 = vld [vmem:[%s1 + $0xa0] sm:$0xff]
  %v108 = vld [vmem:[%s1 + $0xa8] sm:$0xff]
  %v109 = vld [vmem:[%s1 + $0xb0] sm:$0xff]
  %v110 = vld [vmem:[%s1 + $0xb8] sm:$0xff]
  %v111 = vld [vmem:[%s1 + $0xc0] sm:$0xff]
  %v112 = vld [vmem:[%s1 + $0xc8] sm:$0xff]
  %v113 = vld [vmem:[%s1 + $0xd0] sm:$0xff]
  %v114 = vld [vmem:[%s1 + $0xd8] sm:$0xff]
  %v115 = vld [vmem:[%s1 + $0xe0] sm:$0xff]
  %v116 = vld [vmem:[%s1 + $0xe8] sm:$0xff]
  %v117 = vld [vmem:[%s1 + $0xf0] sm:$0xff]
  %v118 = vld [vmem:[%s1 + $0xf8] sm:$0xff]
  %v119 = vld [vmem:[%s1 + $0x100] sm:$0xff]
  %v120 = vld [vmem:[%s1 + $0x108] sm:$0xff]
  %v121 = vld [vmem:[%s1 + $0x110] sm:$0xff]
  %v122 = vld [vmem:[%s1 + $0x118] sm:$0xff]
  %v123 = vld [vmem:[%s1 + $0x120] sm:$0xff]
  %v124 = vld [vmem:[%s1 + $0x128] sm:$0xff]
  %v125 = vld [vmem:[%s1 + $0x130] sm:$0xff]
  %v126 = vld [vmem:[%s1 + $0x138] sm:$0xff]
  %v127 = vld [vmem:[%s1 + $0x140] sm:$0xff]
  %v128 = vld [vmem:[%s1 + $0x148] sm:$0xff]
  %v129 = vld [vmem:[%s1 + $0x150] sm:$0xff]
  %v130 = vld [vmem:[%s1 + $0x158] sm:$0xff]
  %v131 = vld [vmem:[%s1 + $0x160] sm:$0xff]
  %v132 = vld [vmem:[%s1 + $0x168] sm:$0xff]
  %v133 = vld [vmem:[%s1 + $0x170] sm:$0xff]
  %v134 = vld [vmem:[%s1 + $0x178] sm:$0xff]
  %v135 = vld [vmem:[%s1 + $0x180] sm:$0xff]
  %v136 = vld [vmem:[%s1 + $0x188] sm:$0xff]
  %v137 = vld [vmem:[%s1 + $0x190] sm:$0xff]
  %v138 = vld [vmem:[%s1 + $0x198] sm:$0xff]
  %v139 = vld [vmem:[%s1 + $0x1a0] sm:$0xff]
  %v140 = vld [vmem:[%s1 + $0x1a8] sm:$0xff]
  %v141 = vld [vmem:[%s1 + $0x1b0] sm:$0xff]
  %v142 = vld [vmem:[%s1 + $0x1b8] sm:$0xff]
  %v143 = vld [vmem:[%s1 + $0x1c0] sm:$0xff]
  %v144 = vld [vmem:[%s1 + $0x1c8] sm:$0xff]
  %v145 = vld [vmem:[%s1 + $0x1d0] sm:$0xff]
  %v146 = vld [vmem:[%s1 + $0x1d8] sm:$0xff]
  %v147 = vld [vmem:[%s1 + $0x1e0] sm:$0xff]
  %v148 = vld [vmem:[%s1 + $0x1e8] sm:$0xff]
  %v149 = vld [vmem:[%s1 + $0x1f0] sm:$0xff]
  %v150 = vld [vmem:[%s1 + $0x1f8] sm:$0xff]
  %v151 = vmul.f32 %v23, %v23
  %v152 = vmul.f32 %v24, %v24
  %v153 = vmul.f32 %v25, %v25
  %v154 = vmul.f32 %v26, %v26
  %v155 = vmul.f32 %v27, %v27
  %v156 = vmul.f32 %v28, %v28
  %v157 = vmul.f32 %v29, %v29
  %v158 = vmul.f32 %v30, %v30
  %v159 = vmul.f32 %v31, %v31
  %v160 = vmul.f32 %v32, %v32
  %v161 = vmul.f32 %v33, %v33
  %v162 = vmul.f32 %v34, %v34
  %v163 = vmul.f32 %v35, %v35
  %v164 = vmul.f32 %v36, %v36
  %v165 = vmul.f32 %v37, %v37
  %v166 = vmul.f32 %v38, %v38
  %v167 = vmul.f32 %v39, %v39
  %v168 = vmul.f32 %v40, %v40
  %v169 = vmul.f32 %v41, %v41
  %v170 = vmul.f32 %v42, %v42
  %v171 = vmul.f32 %v43, %v43
  %v172 = vmul.f32 %v44, %v44
  %v173 = vmul.f32 %v45, %v45
  %v174 = vmul.f32 %v46, %v46
  %v175 = vmul.f32 %v47, %v47
  %v176 = vmul.f32 %v48, %v48
  %v177 = vmul.f32 %v49, %v49
  %v178 = vmul.f32 %v50, %v50
  %v179 = vmul.f32 %v51, %v51
  %v180 = vmul.f32 %v52, %v52
  %v181 = vmul.f32 %v53, %v53
  %v182 = vmul.f32 %v54, %v54
  %v183 = vmul.f32 %v55, %v55
  %v184 = vmul.f32 %v56, %v56
  %v185 = vmul.f32 %v57, %v57
  %v186 = vmul.f32 %v58, %v58
  %v187 = vmul.f32 %v59, %v59
  %v188 = vmul.f32 %v60, %v60
  %v189 = vmul.f32 %v61, %v61
  %v190 = vmul.f32 %v62, %v62
  %v191 = vmul.f32 %v63, %v63
  %v192 = vmul.f32 %v64, %v64
  %v193 = vmul.f32 %v65, %v65
  %v194 = vmul.f32 %v66, %v66
  %v195 = vmul.f32 %v67, %v67
  %v196 = vmul.f32 %v68, %v68
  %v197 = vmul.f32 %v69, %v69
  %v198 = vmul.f32 %v70, %v70
  %v199 = vmul.f32 %v71, %v71
  %v200 = vmul.f32 %v72, %v72
  %v201 = vmul.f32 %v73, %v73
  %v202 = vmul.f32 %v74, %v74
  %v203 = vmul.f32 %v75, %v75
  %v204 = vmul.f32 %v76, %v76
  %v205 = vmul.f32 %v77, %v77
  %v206 = vmul.f32 %v78, %v78
  %v207 = vmul.f32 %v79, %v79
  %v208 = vmul.f32 %v80, %v80
  %v209 = vmul.f32 %v81, %v81
  %v210 = vmul.f32 %v82, %v82
  %v211 = vmul.f32 %v83, %v83
  %v212 = vmul.f32 %v84, %v84
  %v213 = vmul.f32 %v85, %v85
  %v214 = vmul.f32 %v86, %v86
  %v215 = vmul.f32 %v87, 1.442695
  %v216 = vpow.pop %v215
  %v217 = vmul.f32 %v88, 1.442695
  %v218 = vpow.pop %v217
  %v219 = vmul.f32 %v89, 1.442695
  %v220 = vpow.pop %v219
  %v221 = vmul.f32 %v90, 1.442695
  %v222 = vpow.pop %v221
  %v223 = vmul.f32 %v91, 1.442695
  %v224 = vpow.pop %v223
  %v225 = vmul.f32 %v92, 1.442695
  %v226 = vpow.pop %v225
  %v227 = vmul.f32 %v93, 1.442695
  %v228 = vpow.pop %v227
  %v229 = vmul.f32 %v94, 1.442695
  %v230 = vpow.pop %v229
  %v231 = vmul.f32 %v95, 1.442695
  %v232 = vpow.pop %v231
  %v233 = vmul.f32 %v96, 1.442695
  %v234 = vpow.pop %v233
  %v235 = vmul.f32 %v97, 1.442695
  %v236 = vpow.pop %v235
  %v237 = vmul.f32 %v98, 1.442695
  %v238 = vpow.pop %v237
  %v239 = vmul.f32 %v99, 1.442695
  %v240 = vpow.pop %v239
  %v241 = vmul.f32 %v100, 1.442695
  %v242 = vpow.pop %v241
  %v243 = vmul.f32 %v101, 1.442695
  %v244 = vpow.pop %v243
  %v245 = vmul.f32 %v102, 1.442695
  %v246 = vpow.pop %v245
  %v247 = vmul.f32 %v103, 1.442695
  %v248 = vpow.pop %v247
  %v249 = vmul.f32 %v104, 1.442695
  %v250 = vpow.pop %v249
  %v251 = vmul.f32 %v105, 1.442695
  %v252 = vpow.pop %v251
  %v253 = vmul.f32 %v106, 1.442695
  %v254 = vpow.pop %v253
  %v255 = vmul.f32 %v107, 1.442695
  %v256 = vpow.pop %v255
  %v257 = vmul.f32 %v108, 1.442695
  %v258 = vpow.pop %v257
  %v259 = vmul.f32 %v109, 1.442695
  %v260 = vpow.pop %v259
  %v261 = vmul.f32 %v110, 1.442695
  %v262 = vpow.pop %v261
  %v263 = vmul.f32 %v111, 1.442695
  %v264 = vpow.pop %v263
  %v265 = vmul.f32 %v112, 1.442695
  %v266 = vpow.pop %v265
  %v267 = vmul.f32 %v113, 1.442695
  %v268 = vpow.pop %v267
  %v269 = vmul.f32 %v114, 1.442695
  %v270 = vpow.pop %v269
  %v271 = vmul.f32 %v115, 1.442695
  %v272 = vpow.pop %v271
  %v273 = vmul.f32 %v116, 1.442695
  %v274 = vpow.pop %v273
  %v275 = vmul.f32 %v117, 1.442695
  %v276 = vpow.pop %v275
  %v277 = vmul.f32 %v118, 1.442695
  %v278 = vpow.pop %v277
  %v279 = vmul.f32 %v119, 1.442695
  %v280 = vpow.pop %v279
  %v281 = vmul.f32 %v120, 1.442695
  %v282 = vpow.pop %v281
  %v283 = vmul.f32 %v121, 1.442695
  %v284 = vpow.pop %v283
  %v285 = vmul.f32 %v122, 1.442695
  %v286 = vpow.pop %v285
  %v287 = vmul.f32 %v123, 1.442695
  %v288 = vpow.pop %v287
  %v289 = vmul.f32 %v124, 1.442695
  %v290 = vpow.pop %v289
  %v291 = vmul.f32 %v125, 1.442695
  %v292 = vpow.pop %v291
  %v293 = vmul.f32 %v126, 1.442695
  %v294 = vpow.pop %v293
  %v295 = vmul.f32 %v127, 1.442695
  %v296 = vpow.pop %v295
  %v297 = vmul.f32 %v128, 1.442695
  %v298 = vpow.pop %v297
  %v299 = vmul.f32 %v129, 1.442695
  %v300 = vpow.pop %v299
  %v301 = vmul.f32 %v130, 1.442695
  %v302 = vpow.pop %v301
  %v303 = vmul.f32 %v131, 1.442695
  %v304 = vpow.pop %v303
  %v305 = vmul.f32 %v132, 1.442695
  %v306 = vpow.pop %v305
  %v307 = vmul.f32 %v133, 1.442695
  %v308 = vpow.pop %v307
  %v309 = vmul.f32 %v134, 1.442695
  %v310 = vpow.pop %v309
  %v311 = vmul.f32 %v135, 1.442695
  %v312 = vpow.pop %v311
  %v313 = vmul.f32 %v136, 1.442695
  %v314 = vpow.pop %v313
  %v315 = vmul.f32 %v137, 1.442695
  %v316 = vpow.pop %v315
  %v317 = vmul.f32 %v138, 1.442695
  %v318 = vpow.pop %v317
  %v319 = vmul.f32 %v139, 1.442695
  %v320 = vpow.pop %v319
  %v321 = vmul.f32 %v140, 1.442695
  %v322 = vpow.pop %v321
  %v323 = vmul.f32 %v141, 1.442695
  %v324 = vpow.pop %v323
  %v325 = vmul.f32 %v142, 1.442695
  %v326 = vpow.pop %v325
  %v327 = vmul.f32 %v143, 1.442695
  %v328 = vpow.pop %v327
  %v329 = vmul.f32 %v144, 1.442695
  %v330 = vpow.pop %v329
  %v331 = vmul.f32 %v145, 1.442695
  %v332 = vpow.pop %v331
  %v333 = vmul.f32 %v146, 1.442695
  %v334 = vpow.pop %v333
  %v335 = vmul.f32 %v147, 1.442695
  %v336 = vpow.pop %v335
  %v337 = vmul.f32 %v148, 1.442695
  %v338 = vpow.pop %v337
  %v339 = vmul.f32 %v149, 1.442695
  %v340 = vpow.pop %v339
  %v341 = vmul.f32 %v150, 1.442695
  %v342 = vpow.pop %v341
  %v343 = vsub.f32 %v216, 1.0
  %v344 = vsub.f32 %v218, 1.0
  %v345 = vsub.f32 %v220, 1.0
  %v346 = vsub.f32 %v222, 1.0
  %v347 = vsub.f32 %v224, 1.0
  %v348 = vsub.f32 %v226, 1.0
  %v349 = vsub.f32 %v228, 1.0
  %v350 = vsub.f32 %v230, 1.0
  %v351 = vsub.f32 %v232, 1.0
  %v352 = vsub.f32 %v234, 1.0
  %v353 = vsub.f32 %v236, 1.0
  %v354 = vsub.f32 %v238, 1.0
  %v355 = vsub.f32 %v240, 1.0
  %v356 = vsub.f32 %v242, 1.0
  %v357 = vsub.f32 %v244, 1.0
  %v358 = vsub.f32 %v246, 1.0
  %v359 = vsub.f32 %v248, 1.0
  %v360 = vsub.f32 %v250, 1.0
  %v361 = vsub.f32 %v252, 1.0
  %v362 = vsub.f32 %v254, 1.0
  %v363 = vsub.f32 %v256, 1.0
  %v364 = vsub.f32 %v258, 1.0
  %v365 = vsub.f32 %v260, 1.0
  %v366 = vsub.f32 %v262, 1.0
  %v367 = vsub.f32 %v264, 1.0
  %v368 = vsub.f32 %v266, 1.0
  %v369 = vsub.f32 %v268, 1.0
  %v370 = vsub.f32 %v270, 1.0
  %v371 = vsub.f32 %v272, 1.0
  %v372 = vsub.f32 %v274, 1.0
  %v373 = vsub.f32 %v276, 1.0
  %v374 = vsub.f32 %v278, 1.0
  %v375 = vsub.f32 %v280, 1.0
  %v376 = vsub.f32 %v282, 1.0
  %v377 = vsub.f32 %v284, 1.0
  %v378 = vsub.f32 %v286, 1.0
  %v379 = vsub.f32 %v288, 1.0
  %v380 = vsub.f32 %v290, 1.0
  %v381 = vsub.f32 %v292, 1.0
  %v382 = vsub.f32 %v294, 1.0
  %v383 = vsub.f32 %v296, 1.0
  %v384 = vsub.f32 %v298, 1.0
  %v385 = vsub.f32 %v300, 1.0
  %v386 = vsub.f32 %v302, 1.0
  %v387 = vsub.f32 %v304, 1.0
  %v388 = vsub.f32 %v306, 1.0
  %v389 = vsub.f32 %v308, 1.0
  %v390 = vsub.f32 %v310, 1.0
  %v391 = vsub.f32 %v312, 1.0
  %v392 = vsub.f32 %v314, 1.0
  %v393 = vsub.f32 %v316, 1.0
  %v394 = vsub.f32 %v318, 1.0
  %v395 = vsub.f32 %v320, 1.0
  %v396 = vsub.f32 %v322, 1.0
  %v397 = vsub.f32 %v324, 1.0
  %v398 = vsub.f32 %v326, 1.0
  %v399 = vsub.f32 %v328, 1.0
  %v400 = vsub.f32 %v330, 1.0
  %v401 = vsub.f32 %v332, 1.0
  %v402 = vsub.f32 %v334, 1.0
  %v403 = vsub.f32 %v336, 1.0
  %v404 = vsub.f32 %v338, 1.0
  %v405 = vsub.f32 %v340, 1.0
  %v406 = vsub.f32 %v342, 1.0
  %v407 = vadd.f32 %v151, %v343
  %v408 = vadd.f32 %v152, %v344
  %v409 = vadd.f32 %v153, %v345
  %v410 = vadd.f32 %v154, %v346
  %v411 = vadd.f32 %v155, %v347
  %v412 = vadd.f32 %v156, %v348
  %v413 = vadd.f32 %v157, %v349
  %v414 = vadd.f32 %v158, %v350
  %v415 = vadd.f32 %v159, %v351
  %v416 = vadd.f32 %v160, %v352
  %v417 = vadd.f32 %v161, %v353
  %v418 = vadd.f32 %v162, %v354
  %v419 = vadd.f32 %v163, %v355
  %v420 = vadd.f32 %v164, %v356
  %v421 = vadd.f32 %v165, %v357
  %v422 = vadd.f32 %v166, %v358
  %v423 = vadd.f32 %v167, %v359
  %v424 = vadd.f32 %v168, %v360
  %v425 = vadd.f32 %v169, %v361
  %v426 = vadd.f32 %v170, %v362
  %v427 = vadd.f32 %v171, %v363
  %v428 = vadd.f32 %v172, %v364
  %v429 = vadd.f32 %v173, %v365
  %v430 = vadd.f32 %v174, %v366
  %v431 = vadd.f32 %v175, %v367
  %v432 = vadd.f32 %v176, %v368
  %v433 = vadd.f32 %v177, %v369
  %v434 = vadd.f32 %v178, %v370
  %v435 = vadd.f32 %v179, %v371
  %v436 = vadd.f32 %v180, %v372
  %v437 = vadd.f32 %v181, %v373
  %v438 = vadd.f32 %v182, %v374
  %v439 = vadd.f32 %v183, %v375
  %v440 = vadd.f32 %v184, %v376
  %v441 = vadd.f32 %v185, %v377
  %v442 = vadd.f32 %v186, %v378
  %v443 = vadd.f32 %v187, %v379
  %v444 = vadd.f32 %v188, %v380
  %v445 = vadd.f32 %v189, %v381
  %v446 = vadd.f32 %v190, %v382
  %v447 = vadd.f32 %v191, %v383
  %v448 = vadd.f32 %v192, %v384
  %v449 = vadd.f32 %v193, %v385
  %v450 = vadd.f32 %v194, %v386
  %v451 = vadd.f32 %v195, %v387
  %v452 = vadd.f32 %v196, %v388
  %v453 = vadd.f32 %v197, %v389
  %v454 = vadd.f32 %v198, %v390
  %v455 = vadd.f32 %v199, %v391
  %v456 = vadd.f32 %v200, %v392
  %v457 = vadd.f32 %v201, %v393
  %v458 = vadd.f32 %v202, %v394
  %v459 = vadd.f32 %v203, %v395
  %v460 = vadd.f32 %v204, %v396
  %v461 = vadd.f32 %v205, %v397
  %v462 = vadd.f32 %v206, %v398
  %v463 = vadd.f32 %v207, %v399
  %v464 = vadd.f32 %v208, %v400
  %v465 = vadd.f32 %v209, %v401
  %v466 = vadd.f32 %v210, %v402
  %v467 = vadd.f32 %v211, %v403
  %v468 = vadd.f32 %v212, %v404
  %v469 = vadd.f32 %v213, %v405
  %v470 = vadd.f32 %v214, %v406
  %v471 = vsub.f32 %v407, %v87
  %v472 = vsub.f32 %v408, %v88
  %v473 = vsub.f32 %v409, %v89
  %v474 = vsub.f32 %v410, %v90
  %v475 = vsub.f32 %v411, %v91
  %v476 = vsub.f32 %v412, %v92
  %v477 = vsub.f32 %v413, %v93
  %v478 = vsub.f32 %v414, %v94
  %v479 = vsub.f32 %v415, %v95
  %v480 = vsub.f32 %v416, %v96
  %v481 = vsub.f32 %v417, %v97
  %v482 = vsub.f32 %v418, %v98
  %v483 = vsub.f32 %v419, %v99
  %v484 = vsub.f32 %v420, %v100
  %v485 = vsub.f32 %v421, %v101
  %v486 = vsub.f32 %v422, %v102
  %v487 = vsub.f32 %v423, %v103
  %v488 = vsub.f32 %v424, %v104
  %v489 = vsub.f32 %v425, %v105
  %v490 = vsub.f32 %v426, %v106
  %v491 = vsub.f32 %v427, %v107
  %v492 = vsub.f32 %v428, %v108
  %v493 = vsub.f32 %v429, %v109
  %v494 = vsub.f32 %v430, %v110
  %v495 = vsub.f32 %v431, %v111
  %v496 = vsub.f32 %v432, %v112
  %v497 = vsub.f32 %v433, %v113
  %v498 = vsub.f32 %v434, %v114
  %v499 = vsub.f32 %v435, %v115
  %v500 = vsub.f32 %v436, %v116
  %v501 = vsub.f32 %v437, %v117
  %v502 = vsub.f32 %v438, %v118
  %v503 = vsub.f32 %v439, %v119
  %v504 = vsub.f32 %v440, %v120
  %v505 = vsub.f32 %v441, %v121
  %v506 = vsub.f32 %v442, %v122
  %v507 = vsub.f32 %v443, %v123
  %v508 = vsub.f32 %v444, %v124
  %v509 = vsub.f32 %v445, %v125
  %v510 = vsub.f32 %v446, %v126
  %v511 = vsub.f32 %v447, %v127
  %v512 = vsub.f32 %v448, %v128
  %v513 = vsub.f32 %v449, %v129
  %v514 = vsub.f32 %v450, %v130
  %v515 = vsub.f32 %v451, %v131
  %v516 = vsub.f32 %v452, %v132
  %v517 = vsub.f32 %v453, %v133
  %v518 = vsub.f32 %v454, %v134
  %v519 = vsub.f32 %v455, %v135
  %v520 = vsub.f32 %v456, %v136
  %v521 = vsub.f32 %v457, %v137
  %v522 = vsub.f32 %v458, %v138
  %v523 = vsub.f32 %v459, %v139
  %v524 = vsub.f32 %v460, %v140
  %v525 = vsub.f32 %v461, %v141
  %v526 = vsub.f32 %v462, %v142
  %v527 = vsub.f32 %v463, %v143
  %v528 = vsub.f32 %v464, %v144
  %v529 = vsub.f32 %v465, %v145
  %v530 = vsub.f32 %v466, %v146
  %v531 = vsub.f32 %v467, %v147
  %v532 = vsub.f32 %v468, %v148
  %v533 = vsub.f32 %v469, %v149
  %v534 = vsub.f32 %v470, %v150
  %v535 = vld [vmem:[%s2] sm:$0xff]
  %v536 = vld [vmem:[%s2 + $0x8] sm:$0xff]
  %v537 = vld [vmem:[%s2 + $0x10] sm:$0xff]
  %v538 = vld [vmem:[%s2 + $0x18] sm:$0xff]
  %v539 = vld [vmem:[%s2 + $0x20] sm:$0xff]
  %v540 = vld [vmem:[%s2 + $0x28] sm:$0xff]
  %v541 = vld [vmem:[%s2 + $0x30] sm:$0xff]
  %v542 = vld [vmem:[%s2 + $0x38] sm:$0xff]
  %v543 = vadd.f32 %v471, %v479
  %v544 = vadd.f32 %v543, %v487
  %v545 = vadd.f32 %v544, %v495
  %v546 = vadd.f32 %v545, %v503
  %v547 = vadd.f32 %v546, %v511
  %v548 = vadd.f32 %v547, %v519
  %v549 = vadd.f32 %v548, %v527
  %v550 = vadd.f32 %v472, %v480
  %v551 = vadd.f32 %v550, %v488
  %v552 = vadd.f32 %v551, %v496
  %v553 = vadd.f32 %v552, %v504
  %v554 = vadd.f32 %v553, %v512
  %v555 = vadd.f32 %v554, %v520
  %v556 = vadd.f32 %v555, %v528
  %v557 = vadd.f32 %v473, %v481
  %v558 = vadd.f32 %v557, %v489
  %v559 = vadd.f32 %v558, %v497
  %v560 = vadd.f32 %v559, %v505
  %v561 = vadd.f32 %v560, %v513
  %v562 = vadd.f32 %v561, %v521
  %v563 = vadd.f32 %v562, %v529
  %v564 = vadd.f32 %v474, %v482
  %v565 = vadd.f32 %v564, %v490
  %v566 = vadd.f32 %v565, %v498
  %v567 = vadd.f32 %v566, %v506
  %v568 = vadd.f32 %v567, %v514
  %v569 = vadd.f32 %v568, %v522
  %v570 = vadd.f32 %v569, %v530
  %v571 = vadd.f32 %v475, %v483
  %v572 = vadd.f32 %v571, %v491
  %v573 = vadd.f32 %v572, %v499
  %v574 = vadd.f32 %v573, %v507
  %v575 = vadd.f32 %v574, %v515
  %v576 = vadd.f32 %v575, %v523
  %v577 = vadd.f32 %v576, %v531
  %v578 = vadd.f32 %v476, %v484
  %v579 = vadd.f32 %v578, %v492
  %v580 = vadd.f32 %v579, %v500
  %v581 = vadd.f32 %v580, %v508
  %v582 = vadd.f32 %v581, %v516
  %v583 = vadd.f32 %v582, %v524
  %v584 = vadd.f32 %v583, %v532
  %v585 = vadd.f32 %v477, %v485
  %v586 = vadd.f32 %v585, %v493
  %v587 = vadd.f32 %v586, %v501
  %v588 = vadd.f32 %v587, %v509
  %v589 = vadd.f32 %v588, %v517
  %v590 = vadd.f32 %v589, %v525
  %v591 = vadd.f32 %v590, %v533
  %v592 = vadd.f32 %v478, %v486
  %v593 = vadd.f32 %v592, %v494
  %v594 = vadd.f32 %v593, %v502
  %v595 = vadd.f32 %v594, %v510
  %v596 = vadd.f32 %v595, %v518
  %v597 = vadd.f32 %v596, %v526
  %v598 = vadd.f32 %v597, %v534
  %v599 = vadd.f32 %v535, %v549
  %v600 = vadd.f32 %v536, %v556
  %v601 = vadd.f32 %v537, %v563
  %v602 = vadd.f32 %v538, %v570
  %v603 = vadd.f32 %v539, %v577
  %v604 = vadd.f32 %v540, %v584
  %v605 = vadd.f32 %v541, %v591
  %v606 = vadd.f32 %v542, %v598
  %607 = vst [vmem:[%s2] sm:$0xff] %v599
  %608 = vst [vmem:[%s2 + $0x8] sm:$0xff] %v600
  %609 = vst [vmem:[%s2 + $0x10] sm:$0xff] %v601
  %610 = vst [vmem:[%s2 + $0x18] sm:$0xff] %v602
  %611 = vst [vmem:[%s2 + $0x20] sm:$0xff] %v603
  %612 = vst [vmem:[%s2 + $0x28] sm:$0xff] %v604
  %613 = vst [vmem:[%s2 + $0x30] sm:$0xff] %v605
  %614 = vst [vmem:[%s2 + $0x38] sm:$0xff] %v606
  // Predicated region
  $region14: #{fixed_std_nll_loss.3} parent=0 // pred_check
    _
  $region15: #{fixed_std_nll_loss.3} parent=0 // pred_check_branch
    %616 = sbr.rel (0) target = $region17
  $region16: #{fixed_std_nll_loss.3} parent=0 // pred_region
    _
  $region17: #{fixed_std_nll_loss.3} parent=0 // pred_fallthru
    _
  // Predicated region
  $region18: #{fixed_std_nll_loss.3} parent=0 // pred_check
    _
  $region19: #{fixed_std_nll_loss.3} parent=0 // pred_check_branch
    %618 = sbr.rel (0) target = $region21
  $region20: #{fixed_std_nll_loss.3} parent=0 // pred_region
    _
  $region21: #{fixed_std_nll_loss.3} parent=0 // pred_fallthru
    _

</llo_original>
